<compile_context>
chip_gen: v5e
topology: v5e:2x2
jax: 0.10.0
libtpu: 0.0.40
codegen_flags: <defaults>
</compile_context>

<pallas_src>
import functools

import jax
import jax.numpy as jnp
from jax.experimental import pallas as pl
from jax.experimental.pallas import tpu as pltpu


def _deconv_bn_relu_kernel(slab_ref, params_ref, o_ref, *, B, L_out, KC, eps):
    """Fused ConvTranspose1d + BatchNorm1d(train) + ReLU.

    slab_ref:   (K*C_in, B*L_out)    im2col slab, lane-aligned windows (f32)
    params_ref: (C_out, K*C_in + 3)  [ flipped weight | bias | gamma | beta ]
    o_ref:      (B, C_out, L_out)    output, lane-dense along L_out
    """
    w2d = params_ref[:, :KC]                       # (C_out, K*C_in)
    bias = params_ref[:, KC:KC + 1]                # (C_out, 1)
    gamma = params_ref[:, KC + 1:KC + 2]           # (C_out, 1)
    beta = params_ref[:, KC + 2:KC + 3]            # (C_out, 1)

    # --- transposed conv as one MXU dot over the pre-built im2col slab ------
    y = jnp.dot(w2d, slab_ref[...],
                preferred_element_type=jnp.float32) + bias   # (C_out, B*L_out)

    # --- BatchNorm1d, training mode: biased batch stats over (B, L_out) -----
    inv_n = 1.0 / float(B * L_out)
    mean = jnp.sum(y, axis=-1, keepdims=True) * inv_n        # (C_out, 1)
    d = y - mean                                             # reused below
    var = jnp.sum(d * d, axis=-1, keepdims=True) * inv_n     # biased
    scale = gamma * jax.lax.rsqrt(var + eps)                 # (C_out, 1)

    out = jnp.maximum(d * scale + beta, 0.0)                 # (C_out, B*L_out)

    # --- lane-aligned full-width stores, one per batch element --------------
    for b in range(B):
        o_ref[b] = out[:, b * L_out:(b + 1) * L_out]


@functools.partial(jax.jit, static_argnames=("stride", "padding", "eps"))
def deconv_block(x, weight, bias, gamma, beta, *, stride, padding, eps=1e-5):
    """DeconvBlock forward: ConvTranspose1d(stride, padding) + BN(train) + ReLU.

    x:      (B, C_in, L) float32
    weight: (C_in, C_out, K)   -- PyTorch ConvTranspose1d weight layout
    bias, gamma, beta: (C_out,)
    returns (B, C_out, L_out) float32, L_out = (L-1)*stride - 2*padding + K
    """
    B, C_in, L = x.shape
    c_in_w, C_out, K = weight.shape
    assert c_in_w == C_in
    assert padding <= K - 1, "wrapper assumes padding <= kernel_size - 1"
    # TODO(synk): output_padding and BN running_mean/var momentum updates are
    # not modeled (forward activations only).
    L_out = (L - 1) * stride - 2 * padding + K
    edge = K - 1 - padding
    L_up = (L - 1) * stride + 1
    L_pad = L_up + 2 * edge                     # == L_out + K - 1

    x = x.astype(jnp.float32)

    # zero-stuff by the stride AND edge-pad in a single scatter into the
    # final padded buffer (one XLA op instead of scatter + pad).
    x_pad = jnp.zeros((B, C_in, L_pad), jnp.float32).at[
        :, :, edge:edge + L_up:stride].set(x)

    # im2col slab: row (k*C_in + ci), cols [b*L_out, (b+1)*L_out) = x_pad[b, ci, k:k+L_out]
    idx = jnp.arange(K)[:, None] + jnp.arange(L_out)[None, :]      # (K, L_out)
    windows = jnp.take(x_pad, idx, axis=2)                         # (B, C_in, K, L_out)
    slab = jnp.transpose(windows, (2, 1, 0, 3)).reshape(K * C_in, B * L_out)

    # Parameter slab: flipped/reshaped ConvTranspose1d weight + bias/gamma/beta.
    # w2d[co, k*C_in + ci] = weight[ci, co, K-1-k]
    w2d = jnp.transpose(weight[:, :, ::-1], (1, 2, 0)).reshape(C_out, K * C_in)
    params = jnp.concatenate(
        [w2d.astype(jnp.float32),
         bias.reshape(C_out, 1).astype(jnp.float32),
         gamma.reshape(C_out, 1).astype(jnp.float32),
         beta.reshape(C_out, 1).astype(jnp.float32)], axis=1)      # (C_out, K*C_in+3)

    kernel = functools.partial(
        _deconv_bn_relu_kernel,
        B=B, L_out=L_out, KC=K * C_in, eps=float(eps))

    vmem = pl.BlockSpec(memory_space=pltpu.MemorySpace.VMEM)
    return pl.pallas_call(
        kernel,
        out_shape=jax.ShapeDtypeStruct((B, C_out, L_out), jnp.float32),
        in_specs=[vmem, vmem],
        out_specs=vmem,
    )(slab, params)


if __name__ == "__main__":
    # DeconvBlock(in_channels=4, out_channels=8, kernel_size=4, stride=2, padding=1)
    # with a length-64 input -> output length 128 (lane-dense).
    B, C_in, L = 2, 4, 64
    C_out, K, stride, padding = 8, 4, 2, 1
    eps = 1e-5

    key = jax.random.PRNGKey(0)
    k_x, k_w, k_b, k_g, k_bt = jax.random.split(key, 5)

    x = jax.random.normal(k_x, (B, C_in, L), dtype=jnp.float32)
    bound = 1.0 / (C_in * K) ** 0.5
    weight = jax.random.uniform(k_w, (C_in, C_out, K), jnp.float32, -bound, bound)
    bias = jax.random.uniform(k_b, (C_out,), jnp.float32, -bound, bound)
    gamma = 1.0 + 0.1 * jax.random.normal(k_g, (C_out,), jnp.float32)
    beta = 0.1 * jax.random.normal(k_bt, (C_out,), jnp.float32)

    out = deconv_block(x, weight, bias, gamma, beta,
                       stride=stride, padding=padding, eps=eps)
    out = jax.block_until_ready(out)

    # ---- pure-JAX reference mirroring the PyTorch forward --------------------
    kern = jnp.transpose(weight[:, :, ::-1], (1, 0, 2))          # (C_out, C_in, K)
    y = jax.lax.conv_general_dilated(
        x, kern,
        window_strides=(1,),
        padding=[(K - 1 - padding, K - 1 - padding)],
        lhs_dilation=(stride,),
        rhs_dilation=(1,),
        dimension_numbers=("NCH", "OIH", "NCH"),
        precision=jax.lax.Precision.HIGHEST,
    ) + bias[None, :, None]
    mean = y.mean(axis=(0, 2), keepdims=True)
    var = ((y - mean) ** 2).mean(axis=(0, 2), keepdims=True)     # biased, as PyTorch
    ref = jnp.maximum(
        (y - mean) / jnp.sqrt(var + eps) * gamma[None, :, None] + beta[None, :, None],
        0.0)

    L_out = (L - 1) * stride - 2 * padding + K
    assert out.shape == (B, C_out, L_out), out.shape
    assert jnp.allclose(out, ref, atol=1e-4, rtol=1e-4), \
        float(jnp.max(jnp.abs(out - ref)))
    print("KERNEL_OK")
</pallas_src>

<mosaic_0001>
module attributes {stable_mosaic.version = 11 : i64} {
  func.func @_deconv_bn_relu_kernel(%arg0: memref<16x256xf32, #tpu.memory_space<vmem>>, %arg1: memref<8x19xf32, #tpu.memory_space<vmem>>, %arg2: memref<2x8x128xf32, #tpu.memory_space<vmem>>) attributes {dimension_semantics = [], scalar_prefetch = 0 : i64, scratch_operands = 0 : i64, tpu.core_type = #tpu.core_type<tc>} {
    %c0 = arith.constant 0 : index
    %c0_0 = arith.constant 0 : index
    %0 = vector.load %arg1[%c0, %c0_0] : memref<8x19xf32, #tpu.memory_space<vmem>>, vector<8x16xf32>
    %c0_1 = arith.constant 0 : index
    %c16 = arith.constant 16 : index
    %1 = vector.load %arg1[%c0_1, %c16] : memref<8x19xf32, #tpu.memory_space<vmem>>, vector<8x1xf32>
    %c0_2 = arith.constant 0 : index
    %c17 = arith.constant 17 : index
    %2 = vector.load %arg1[%c0_2, %c17] : memref<8x19xf32, #tpu.memory_space<vmem>>, vector<8x1xf32>
    %c0_3 = arith.constant 0 : index
    %c18 = arith.constant 18 : index
    %3 = vector.load %arg1[%c0_3, %c18] : memref<8x19xf32, #tpu.memory_space<vmem>>, vector<8x1xf32>
    %c0_4 = arith.constant 0 : index
    %c0_5 = arith.constant 0 : index
    %4 = vector.load %arg0[%c0_4, %c0_5] : memref<16x256xf32, #tpu.memory_space<vmem>>, vector<16x256xf32>
    %cst = arith.constant dense<0.000000e+00> : vector<8x256xf32>
    %5 = tpu.matmul %0, %4, %cst {dimension_numbers = #tpu.dot_dimension_numbers<[1], [0], [0], [1], [0, 0, 1, 1], [], []>} : vector<8x16xf32>, vector<16x256xf32>, vector<8x256xf32> -> vector<8x256xf32>
    %6 = vector.broadcast %1 : vector<8x1xf32> to vector<8x256xf32>
    %7 = arith.addf %5, %6 : vector<8x256xf32>
    %cst_6 = arith.constant dense<0.000000e+00> : vector<8xf32>
    %8 = vector.multi_reduction <add>, %7, %cst_6 [1] : vector<8x256xf32> to vector<8xf32>
    %9 = vector.shape_cast %8 : vector<8xf32> to vector<8x1xf32>
    %cst_7 = arith.constant 3.906250e-03 : f32
    %10 = vector.broadcast %cst_7 : f32 to vector<8x1xf32>
    %11 = arith.mulf %9, %10 : vector<8x1xf32>
    %12 = vector.broadcast %11 : vector<8x1xf32> to vector<8x256xf32>
    %13 = arith.subf %7, %12 : vector<8x256xf32>
    %14 = arith.mulf %13, %13 : vector<8x256xf32>
    %cst_8 = arith.constant dense<0.000000e+00> : vector<8xf32>
    %15 = vector.multi_reduction <add>, %14, %cst_8 [1] : vector<8x256xf32> to vector<8xf32>
    %16 = vector.shape_cast %15 : vector<8xf32> to vector<8x1xf32>
    %cst_9 = arith.constant 3.906250e-03 : f32
    %17 = vector.broadcast %cst_9 : f32 to vector<8x1xf32>
    %18 = arith.mulf %16, %17 : vector<8x1xf32>
    %cst_10 = arith.constant 9.99999974E-6 : f32
    %19 = vector.broadcast %cst_10 : f32 to vector<8x1xf32>
    %20 = arith.addf %18, %19 : vector<8x1xf32>
    %21 = math.rsqrt %20 : vector<8x1xf32>
    %22 = arith.mulf %2, %21 : vector<8x1xf32>
    %23 = vector.broadcast %22 : vector<8x1xf32> to vector<8x256xf32>
    %24 = arith.mulf %13, %23 : vector<8x256xf32>
    %25 = vector.broadcast %3 : vector<8x1xf32> to vector<8x256xf32>
    %26 = arith.addf %24, %25 : vector<8x256xf32>
    %cst_11 = arith.constant 0.000000e+00 : f32
    %27 = vector.broadcast %cst_11 : f32 to vector<8x256xf32>
    %28 = arith.maximumf %26, %27 : vector<8x256xf32>
    %29 = vector.extract_strided_slice %28 {offsets = [0, 0], sizes = [8, 128], strides = [1, 1]} : vector<8x256xf32> to vector<8x128xf32>
    %c0_12 = arith.constant 0 : index
    %c0_13 = arith.constant 0 : index
    %c0_14 = arith.constant 0 : index
    %30 = vector.load %arg2[%c0_12, %c0_13, %c0_14] : memref<2x8x128xf32, #tpu.memory_space<vmem>>, vector<1x8x128xf32>
    %31 = vector.shape_cast %30 : vector<1x8x128xf32> to vector<8x128xf32>
    %32 = vector.shape_cast %29 : vector<8x128xf32> to vector<1x8x128xf32>
    tpu.vector_store %arg2[%c0_12, %c0_13, %c0_14], %32 {strides = array<i32>} : memref<2x8x128xf32, #tpu.memory_space<vmem>>, vector<1x8x128xf32>,
    %33 = vector.extract_strided_slice %28 {offsets = [0, 128], sizes = [8, 128], strides = [1, 1]} : vector<8x256xf32> to vector<8x128xf32>
    %c1 = arith.constant 1 : index
    %c0_15 = arith.constant 0 : index
    %c0_16 = arith.constant 0 : index
    %34 = vector.load %arg2[%c1, %c0_15, %c0_16] : memref<2x8x128xf32, #tpu.memory_space<vmem>>, vector<1x8x128xf32>
    %35 = vector.shape_cast %34 : vector<1x8x128xf32> to vector<8x128xf32>
    %36 = vector.shape_cast %33 : vector<8x128xf32> to vector<1x8x128xf32>
    tpu.vector_store %arg2[%c1, %c0_15, %c0_16], %36 {strides = array<i32>} : memref<2x8x128xf32, #tpu.memory_space<vmem>>, vector<1x8x128xf32>,
    return
  }
}

</mosaic_0001>

<llo_original>
// kernel: deconv_block.1
$region0: #{deconv_block.1}
  #allocation0 [shape = 'u32[]', space=smem, size = 0x4, offset = 0x4, fixed_abs, tag = 'smem constant byte address 0x4 - core index']
  #allocation1 [shape = 'u32[72,128]{1,0:T(1,128)}', space=vmem, size = 0x9000, scoped, tag = 'internal scratch']
  %s0 = inlined_call_operand.vmem [shape: f32[16,256], index: 0, kind: input, shape index: {}]
  %s1 = inlined_call_operand.vmem [shape: f32[8,19], index: 1, kind: input, shape index: {}]
  %s2 = inlined_call_operand.hbm [shape: f32[2,8,128], index: 2, kind: output, shape index: {}]
  %s3 = sld [smem:[#allocation0]]
  $region18: #{deconv_block.1} parent=0
    _
  %s5 = ssub.s32 1, %s3
  %s6 = scalar_select 0, %s5, %s3
  $region1: #{deconv_block.1} parent=0
    #allocation2 [shape = 'u8[8192]{0}', space=vmem, size = 0x2000, scoped, tag = 'output window, operand 0, single buffered']
    #allocation3 [shape = 's32[1]{0}', space=sflag, size = 0x4, scoped, tag = 'scoped memory for deconv_block.1']
    %7 = vsyncpa [#allocation3], 0
    // Predicated region
    $region2: #{deconv_block.1} parent=1 // pred_check
      _
    $region3: #{deconv_block.1} parent=1 // pred_check_branch
      %9 = sbr.rel (0) target = $region5
    $region4: #{deconv_block.1} parent=1 // pred_region
      _
    $region5: #{deconv_block.1} parent=1 // pred_fallthru
      _
    // Predicated region
    $region6: #{deconv_block.1} parent=1 // pred_check
      _
    $region7: #{deconv_block.1} parent=1 // pred_check_branch
      %11 = sbr.rel (0) target = $region9
    $region8: #{deconv_block.1} parent=1 // pred_region
      _
    $region9: #{deconv_block.1} parent=1 // pred_fallthru
      _
    %v12 = vld [vmem:[%s1] sm:$0xff]
    %v13 = vld [vmem:[%s0] sm:$0xff]
    %v14 = vld [vmem:[%s0 + $0x8] sm:$0xff]
    %v15 = vld [vmem:[%s0 + $0x10] sm:$0xff]
    %v16 = vld [vmem:[%s0 + $0x18] sm:$0xff]
    %18 = vset.pattern.permute.xlu0 16
    %19 = vperm.xlu0 %18, %v12
    %v20 = vpop.permute.xlu0 %19
    %vm22 = vcmask 130048
    %v23 = vsel %vm22, %v12, 0
    %25 = vmatpush.msra.mxu0 0.0
    %26 = vmatpush.msra.mxu0 0.0
    %27 = vmatpush.msra.mxu0 0.0
    %28 = vmatpush.msra.mxu0 0.0
    %29 = vmatpush.msra.mxu0 0.0
    %30 = vmatpush.msra.mxu0 0.0
    %31 = vmatpush.msra.mxu0 0.0
    %32 = vmatpush.msra.mxu0 0.0
    %33 = vmatpush.msra.mxu0 0.0
    %34 = vmatpush.msra.mxu0 0.0
    %35 = vmatpush.msra.mxu0 0.0
    %36 = vmatpush.msra.mxu0 0.0
    %37 = vmatpush.msra.mxu0 0.0
    %38 = vmatpush.msra.mxu0 0.0
    %39 = vmatpush.msra.mxu0 %v15
    %40 = vmatpush.msra.mxu0 %v13
    %41 = vmatmul.f32.gmra.mxu0 %v23
    %v42 = vpop.f32.mrf.mxu0
    %v43 = vadd.f32 %v20, %v42
    %44 = vdwg.mxu0
    %45 = vmatpush.msra.mxu0 0.0
    %46 = vmatpush.msra.mxu0 0.0
    %47 = vmatpush.msra.mxu0 0.0
    %48 = vmatpush.msra.mxu0 0.0
    %49 = vmatpush.msra.mxu0 0.0
    %50 = vmatpush.msra.mxu0 0.0
    %51 = vmatpush.msra.mxu0 0.0
    %52 = vmatpush.msra.mxu0 0.0
    %53 = vmatpush.msra.mxu0 0.0
    %54 = vmatpush.msra.mxu0 0.0
    %55 = vmatpush.msra.mxu0 0.0
    %56 = vmatpush.msra.mxu0 0.0
    %57 = vmatpush.msra.mxu0 0.0
    %58 = vmatpush.msra.mxu0 0.0
    %59 = vmatpush.msra.mxu0 %v16
    %60 = vmatpush.msra.mxu0 %v14
    %61 = vmatmul.f32.gmra.mxu0 %v23
    %v62 = vpop.f32.mrf.mxu0
    %v63 = vadd.f32 %v20, %v62
    %64 = vdwg.mxu0
    %v65 = vadd.f32 %v43, %v63
    %66 = vadd.xlane.f32.xlu0 %v65
    %v67 = vpop.xlane.xlu0 %66
    %v68 = vmul.f32 %v67, 0.00390625
    %v69 = vsub.f32 %v43, %v68
    %v70 = vsub.f32 %v63, %v68
    %v71 = vmul.f32 %v69, %v69
    %v72 = vmul.f32 %v70, %v70
    %v73 = vadd.f32 %v71, %v72
    %74 = vadd.xlane.f32.xlu0 %v73
    %v75 = vpop.xlane.xlu0 %74
    %v76 = vmul.f32 %v75, 0.00390625
    %v77 = vadd.f32 %v76, 1e-05
    %v78 = vrsqrt.pop %v77
    %v79 = vmul.f32 %v78, %v77
    %v80 = vmul.f32 %v79, %v78
    %v81 = vmul.f32 0.5, %v80
    %v82 = vsub.f32 1.5, %v81
    %v83 = vmul.f32 %v78, %v82
    %vm84 = vweird.f32 %v77
    %vm85 = vweird.f32 %v78
    %vm86 = vmor %vm84, %vm85
    %v87 = vsel %vm86, %v78, %v83
    %v88 = vmul.f32 %v12, %v87
    %90 = vset.pattern.permute.xlu0 17
    %91 = vperm.xlu0 %90, %v88
    %v92 = vpop.permute.xlu0 %91
    %v94 = vmul.f32 %v69, %v92
    %v95 = vmul.f32 %v70, %v92
    %96 = vset.pattern.permute.xlu0 18
    %97 = vperm.xlu0 %96, %v12
    %v98 = vpop.permute.xlu0 %97
    %v100 = vadd.f32 %v94, %v98
    %v101 = vadd.f32 %v95, %v98
    %v102 = vmax.f32 %v100, 0.0
    %v103 = vmax.f32 %v101, 0.0
    %104 = vst [vmem:[#allocation2] sm:$0xff] %v102
    %s105 = scalar_lea.vmem [#allocation2], 8
    %106 = vst [vmem:[%s105] sm:$0xff] %v103
    // Predicated region
    $region10: #{deconv_block.1} parent=1 // pred_check
      _
    $region11: #{deconv_block.1} parent=1 // pred_check_branch
      %108 = sbr.rel (0) target = $region13
    $region12: #{deconv_block.1} parent=1 // pred_region
      %110 = vsyncadd [#allocation3], 0
      %s111 = sshll.u32 [#allocation2], 4
      %s112 = int_to_ptr.vmem [resolvable:$true] %s111
      %s113 = sshll.u32 %s2, 4
      %s114 = int_to_ptr.hbm [resolvable:$true] %s113
      %119 = dma.vmem_to_hbm [thread:$0]  %s112, 256, %s114, [#allocation3], 128, 128, 8
    $region13: #{deconv_block.1} parent=1 // pred_fallthru
      _
    // Predicated region
    $region14: #{deconv_block.1} parent=1 // pred_check
      _
    $region15: #{deconv_block.1} parent=1 // pred_check_branch
      %121 = sbr.rel (0) target = $region17
    $region16: #{deconv_block.1} parent=1 // pred_region
      %123 = dma.done [#allocation3], 256
    $region17: #{deconv_block.1} parent=1 // pred_fallthru
      _
    %124 = vsyncpa [#allocation3], 1

</llo_original>
